<compile_context>
chip_gen: v7x
topology: tpu7x:2x2x1
jax: 0.10.0
libtpu: 0.0.40
codegen_flags: <defaults>
</compile_context>

<pallas_src>
import functools

import jax
import jax.numpy as jnp
from jax import lax
from jax.experimental import pallas as pl
from jax.experimental.pallas import tpu as pltpu


_BN_EPS = 1e-5


def _round_up(x, m):
    return (x + m - 1) // m * m


def _conv_taps(x_ref, w_ref, g, offsets):
    """Accumulate the KH*KW shifted matmuls -> (C_out, G) float32.

    x_ref : (1, C_in_p, L_pad) bf16  flattened, zero-padded image
    w_ref : (KH*KW, C_out, C_in_p) bf16 tap stack
    """
    xw = x_ref[0]                                     # one VMEM load of the image block
    c_out = w_ref.shape[1]
    acc = jnp.zeros((c_out, g), jnp.float32)
    for k, off in enumerate(offsets):                 # static unroll over the taps
        xs = xw[:, off:off + g]                       # (C_in_p, G) static lane-offset view
        acc = acc + jnp.dot(w_ref[k], xs, preferred_element_type=jnp.float32)
    return acc


# ---------------------------------------------------------------------------
# Pass 1: conv matmuls + per-image partial BN statistics (y never hits HBM).
# Output block (1, C_out, 128): lane 0 = per-channel sum, lane 1 = sum of sq.
# ---------------------------------------------------------------------------
def _stats_kernel(x_ref, w_ref, mask_ref, part_ref, *, offsets):
    g = mask_ref.shape[1]
    acc = _conv_taps(x_ref, w_ref, g, offsets)        # (C_out, G) f32
    mask = mask_ref[...]                              # (1, G): 1.0 on valid columns
    ym = acc * mask                                   # junk columns -> 0 in the stats
    s = jnp.sum(ym, axis=1, keepdims=True)            # (C_out, 1)
    q = jnp.sum(ym * acc, axis=1, keepdims=True)      # (C_out, 1)
    col = lax.broadcasted_iota(jnp.int32, part_ref.shape[1:], 1)
    part_ref[0] = jnp.where(col == 0, s, jnp.where(col == 1, q, 0.0))


# ---------------------------------------------------------------------------
# Pass 2: same conv matmuls, then y * scale + shift in f32, stored transposed
# (channels on sublanes, flattened spatial on lanes) -> NCHW needs no transpose.
# ---------------------------------------------------------------------------
def _apply_kernel(x_ref, w_ref, scale_ref, shift_ref, o_ref, *, offsets):
    g = o_ref.shape[2]
    acc = _conv_taps(x_ref, w_ref, g, offsets)        # (C_out, G) f32
    o_ref[0] = (acc * scale_ref[...] + shift_ref[...]).astype(o_ref.dtype)


def conv_block(x_nchw, weight, bias, gamma, beta, *, stride=1, padding=1,
               use_batchnorm=True):
    """Forward of Conv(in_ch, out_ch, 3, stride, padding, use_batchnorm).

    x_nchw : (N, C_in, H, W)        float32
    weight : (C_out, C_in, KH, KW)  float32 (PyTorch Conv2d layout)
    bias   : (C_out,)               float32 (cancels under training-mode BN)
    gamma  : (C_out,)               float32 (BatchNorm weight)
    beta   : (C_out,)               float32 (BatchNorm bias)
    returns: (N, C_out, H_out, W_out) float32 in NCHW
    """
    N, C_in, H, W = x_nchw.shape
    C_out, _, KH, KW = weight.shape
    if stride != 1:
        # TODO(synk): stride > 1 breaks the flat-offset tap trick; not implemented.
        raise NotImplementedError("Pallas conv_block currently supports stride=1 only")

    H_pad, W_pad = H + 2 * padding, W + 2 * padding
    H_out = H_pad - KH + 1
    W_out = W_pad - KW + 1
    L = H_pad * W_pad
    G = H_out * W_pad                    # flat output span; columns >= W_out are junk
    C_in_p = _round_up(C_in, 8)          # sublane-align the contraction dim
    L_pad = L + (KW - 1)                 # keep every tap window off:off+G in bounds

    # Zero-pad spatially + channel-pad (stays in PyTorch NCHW layout), flatten
    # the spatial dims, cast to bf16 for the MXU (f32 accumulation in-kernel).
    xp = jnp.pad(x_nchw, ((0, 0), (0, C_in_p - C_in),
                          (padding, padding), (padding, padding)))
    x_flat = jnp.pad(xp.reshape(N, C_in_p, L), ((0, 0), (0, 0), (0, L_pad - L)))
    x_flat = x_flat.astype(jnp.bfloat16)

    # (C_out, C_in, KH, KW) -> (KH*KW, C_out, C_in_p) tap stack (tiny, bf16).
    w_stack = jnp.transpose(weight, (2, 3, 0, 1)).reshape(KH * KW, C_out, C_in)
    w_stack = jnp.pad(w_stack, ((0, 0), (0, 0), (0, C_in_p - C_in))).astype(jnp.bfloat16)

    # Static per-tap flat offsets into the padded image: off = kh*W_pad + kw.
    offsets = tuple(kh * W_pad + kw for kh in range(KH) for kw in range(KW))

    # Validity mask over the flat span (1.0 where the column is a real output col).
    col = jnp.arange(G, dtype=jnp.int32) % W_pad
    mask = (col < W_out).astype(jnp.float32).reshape(1, G)

    compiler_params = pltpu.CompilerParams(
        # Per-image grid steps are fully independent; N=2 keeps both v7x TCs busy.
        dimension_semantics=("parallel",),
    )

    x_spec = pl.BlockSpec((1, C_in_p, L_pad), lambda n: (n, 0, 0))
    w_spec = pl.BlockSpec((KH * KW, C_out, C_in_p), lambda n: (0, 0, 0))

    M = N * H_out * W_out

    if use_batchnorm:
        partials = pl.pallas_call(
            functools.partial(_stats_kernel, offsets=offsets),
            out_shape=jax.ShapeDtypeStruct((N, C_out, 128), jnp.float32),
            grid=(N,),
            in_specs=[x_spec, w_spec, pl.BlockSpec((1, G), lambda n: (0, 0))],
            out_specs=pl.BlockSpec((1, C_out, 128), lambda n: (n, 0, 0)),
            compiler_params=compiler_params,
        )(x_flat, w_stack, mask)

        ch_sum = jnp.sum(partials[:, :, 0], axis=0)          # (C_out,)
        ch_sq = jnp.sum(partials[:, :, 1], axis=0)           # (C_out,)
        mean = ch_sum / M                                     # divide by the TRUE count
        # TODO(synk): E[y^2]-E[y]^2 is cancellation-prone if |mean| >> std; a
        # Welford-style per-image (count, mean, M2) combine would be more robust.
        var = jnp.maximum(ch_sq / M - mean * mean, 0.0)       # biased variance
        inv = lax.rsqrt(var + _BN_EPS)
        scale = gamma.astype(jnp.float32) * inv               # (C_out,)
        shift = beta.astype(jnp.float32) - mean * scale       # (C_out,)
        # Conv bias cancels exactly in (y - mean) under training-mode BN: dropped.
    else:
        scale = jnp.ones((C_out,), jnp.float32)
        shift = bias.astype(jnp.float32)

    out_flat = pl.pallas_call(
        functools.partial(_apply_kernel, offsets=offsets),
        out_shape=jax.ShapeDtypeStruct((N, C_out, G), jnp.float32),
        grid=(N,),
        in_specs=[x_spec, w_spec,
                  pl.BlockSpec((C_out, 1), lambda n: (0, 0)),
                  pl.BlockSpec((C_out, 1), lambda n: (0, 0))],
        out_specs=pl.BlockSpec((1, C_out, G), lambda n: (n, 0, 0)),
        compiler_params=compiler_params,
    )(x_flat, w_stack, scale.reshape(C_out, 1), shift.reshape(C_out, 1))

    # (N, C_out, G) -> (N, C_out, H_out, W_pad) is a free reshape (no transpose);
    # trimming the KW-1 junk columns is the only residual wrapper-side copy.
    out = out_flat.reshape(N, C_out, H_out, W_pad)[:, :, :, :W_out]
    return out


if __name__ == "__main__":
    # Small deterministic setup consistent with the module.
    N, C_in, H, W = 2, 4, 16, 16
    C_out, KH, KW = 8, 3, 3

    key = jax.random.PRNGKey(0)
    kx, kw, kb = jax.random.split(key, 3)

    x = jax.random.normal(kx, (N, C_in, H, W), dtype=jnp.float32)

    # Deterministic parameter init (shapes match nn.Conv2d / nn.BatchNorm2d).
    fan_in = C_in * KH * KW
    bound = 1.0 / (fan_in ** 0.5)
    weight = jax.random.uniform(kw, (C_out, C_in, KH, KW),
                                minval=-bound, maxval=bound, dtype=jnp.float32)
    bias = jax.random.uniform(kb, (C_out,),
                              minval=-bound, maxval=bound, dtype=jnp.float32)
    gamma = jnp.ones((C_out,), jnp.float32)   # BatchNorm2d.weight init
    beta = jnp.zeros((C_out,), jnp.float32)   # BatchNorm2d.bias init

    out = conv_block(x, weight, bias, gamma, beta, stride=1, padding=1)
    out = jax.block_until_ready(out)

    assert out.shape == (N, C_out, H, W), out.shape
    assert bool(jnp.all(jnp.isfinite(out)))

    # Pure-JAX f32 reference: Conv2d(+bias) then training-mode BatchNorm2d.
    y = lax.conv_general_dilated(
        x, weight, window_strides=(1, 1), padding=((1, 1), (1, 1)),
        dimension_numbers=("NCHW", "OIHW", "NCHW"),
        precision=lax.Precision.HIGHEST) + bias[None, :, None, None]
    mu = y.mean(axis=(0, 2, 3), keepdims=True)
    var = y.var(axis=(0, 2, 3), keepdims=True)          # biased variance
    ref = ((y - mu) * lax.rsqrt(var + _BN_EPS) * gamma[None, :, None, None]
           + beta[None, :, None, None])
    err = float(jnp.max(jnp.abs(out - ref)))
    assert err < 5e-2, f"max abs err vs f32 reference: {err}"   # bf16 MXU tolerance

    print("KERNEL_OK")
</pallas_src>

<mosaic_0001>
module attributes {stable_mosaic.version = 11 : i64} {
  func.func @_stats_kernel(%arg0: i32, %arg1: memref<1x8x326xbf16, #tpu.memory_space<vmem>>, %arg2: memref<9x8x8xbf16, #tpu.memory_space<vmem>>, %arg3: memref<1x288xf32, #tpu.memory_space<vmem>>, %arg4: memref<1x8x128xf32, #tpu.memory_space<vmem>>) attributes {dimension_semantics = [#tpu.dimension_semantics<parallel>], iteration_bounds = array<i64: 2>, scalar_prefetch = 0 : i64, scratch_operands = 0 : i64, tpu.core_type = #tpu.core_type<tc>, window_params = [{transform_indices = @transform_0, window_bounds = array<i64: 1, 8, 326>}, {pipeline_mode = #tpu.pipeline_mode<synchronous>, transform_indices = @transform_1, window_bounds = array<i64: 9, 8, 8>}, {pipeline_mode = #tpu.pipeline_mode<synchronous>, transform_indices = @transform_2, window_bounds = array<i64: 1, 288>}, {transform_indices = @transform_3, window_bounds = array<i64: 1, 8, 128>}]} {
    %c0 = arith.constant 0 : index
    %c0_0 = arith.constant 0 : index
    %c0_1 = arith.constant 0 : index
    %0 = vector.load %arg1[%c0, %c0_0, %c0_1] : memref<1x8x326xbf16, #tpu.memory_space<vmem>>, vector<1x8x326xbf16>
    %1 = vector.shape_cast %0 : vector<1x8x326xbf16> to vector<8x326xbf16>
    %cst = arith.constant 0.000000e+00 : f32
    %2 = vector.broadcast %cst : f32 to vector<8x288xf32>
    %3 = vector.extract_strided_slice %1 {offsets = [0, 0], sizes = [8, 288], strides = [1, 1]} : vector<8x326xbf16> to vector<8x288xbf16>
    %c0_2 = arith.constant 0 : index
    %c0_3 = arith.constant 0 : index
    %c0_4 = arith.constant 0 : index
    %4 = vector.load %arg2[%c0_2, %c0_3, %c0_4] : memref<9x8x8xbf16, #tpu.memory_space<vmem>>, vector<1x8x8xbf16>
    %5 = vector.shape_cast %4 : vector<1x8x8xbf16> to vector<8x8xbf16>
    %cst_5 = arith.constant dense<0.000000e+00> : vector<8x288xf32>
    %6 = tpu.matmul %5, %3, %cst_5 {dimension_numbers = #tpu.dot_dimension_numbers<[1], [0], [0], [1], [0, 0, 1, 1], [], []>} : vector<8x8xbf16>, vector<8x288xbf16>, vector<8x288xf32> -> vector<8x288xf32>
    %7 = arith.addf %2, %6 : vector<8x288xf32>
    %8 = vector.extract_strided_slice %1 {offsets = [0, 1], sizes = [8, 288], strides = [1, 1]} : vector<8x326xbf16> to vector<8x288xbf16>
    %c1 = arith.constant 1 : index
    %c0_6 = arith.constant 0 : index
    %c0_7 = arith.constant 0 : index
    %9 = vector.load %arg2[%c1, %c0_6, %c0_7] : memref<9x8x8xbf16, #tpu.memory_space<vmem>>, vector<1x8x8xbf16>
    %10 = vector.shape_cast %9 : vector<1x8x8xbf16> to vector<8x8xbf16>
    %cst_8 = arith.constant dense<0.000000e+00> : vector<8x288xf32>
    %11 = tpu.matmul %10, %8, %cst_8 {dimension_numbers = #tpu.dot_dimension_numbers<[1], [0], [0], [1], [0, 0, 1, 1], [], []>} : vector<8x8xbf16>, vector<8x288xbf16>, vector<8x288xf32> -> vector<8x288xf32>
    %12 = arith.addf %7, %11 : vector<8x288xf32>
    %13 = vector.extract_strided_slice %1 {offsets = [0, 2], sizes = [8, 288], strides = [1, 1]} : vector<8x326xbf16> to vector<8x288xbf16>
    %c2 = arith.constant 2 : index
    %c0_9 = arith.constant 0 : index
    %c0_10 = arith.constant 0 : index
    %14 = vector.load %arg2[%c2, %c0_9, %c0_10] : memref<9x8x8xbf16, #tpu.memory_space<vmem>>, vector<1x8x8xbf16>
    %15 = vector.shape_cast %14 : vector<1x8x8xbf16> to vector<8x8xbf16>
    %cst_11 = arith.constant dense<0.000000e+00> : vector<8x288xf32>
    %16 = tpu.matmul %15, %13, %cst_11 {dimension_numbers = #tpu.dot_dimension_numbers<[1], [0], [0], [1], [0, 0, 1, 1], [], []>} : vector<8x8xbf16>, vector<8x288xbf16>, vector<8x288xf32> -> vector<8x288xf32>
    %17 = arith.addf %12, %16 : vector<8x288xf32>
    %18 = vector.extract_strided_slice %1 {offsets = [0, 18], sizes = [8, 288], strides = [1, 1]} : vector<8x326xbf16> to vector<8x288xbf16>
    %c3 = arith.constant 3 : index
    %c0_12 = arith.constant 0 : index
    %c0_13 = arith.constant 0 : index
    %19 = vector.load %arg2[%c3, %c0_12, %c0_13] : memref<9x8x8xbf16, #tpu.memory_space<vmem>>, vector<1x8x8xbf16>
    %20 = vector.shape_cast %19 : vector<1x8x8xbf16> to vector<8x8xbf16>
    %cst_14 = arith.constant dense<0.000000e+00> : vector<8x288xf32>
    %21 = tpu.matmul %20, %18, %cst_14 {dimension_numbers = #tpu.dot_dimension_numbers<[1], [0], [0], [1], [0, 0, 1, 1], [], []>} : vector<8x8xbf16>, vector<8x288xbf16>, vector<8x288xf32> -> vector<8x288xf32>
    %22 = arith.addf %17, %21 : vector<8x288xf32>
    %23 = vector.extract_strided_slice %1 {offsets = [0, 19], sizes = [8, 288], strides = [1, 1]} : vector<8x326xbf16> to vector<8x288xbf16>
    %c4 = arith.constant 4 : index
    %c0_15 = arith.constant 0 : index
    %c0_16 = arith.constant 0 : index
    %24 = vector.load %arg2[%c4, %c0_15, %c0_16] : memref<9x8x8xbf16, #tpu.memory_space<vmem>>, vector<1x8x8xbf16>
    %25 = vector.shape_cast %24 : vector<1x8x8xbf16> to vector<8x8xbf16>
    %cst_17 = arith.constant dense<0.000000e+00> : vector<8x288xf32>
    %26 = tpu.matmul %25, %23, %cst_17 {dimension_numbers = #tpu.dot_dimension_numbers<[1], [0], [0], [1], [0, 0, 1, 1], [], []>} : vector<8x8xbf16>, vector<8x288xbf16>, vector<8x288xf32> -> vector<8x288xf32>
    %27 = arith.addf %22, %26 : vector<8x288xf32>
    %28 = vector.extract_strided_slice %1 {offsets = [0, 20], sizes = [8, 288], strides = [1, 1]} : vector<8x326xbf16> to vector<8x288xbf16>
    %c5 = arith.constant 5 : index
    %c0_18 = arith.constant 0 : index
    %c0_19 = arith.constant 0 : index
    %29 = vector.load %arg2[%c5, %c0_18, %c0_19] : memref<9x8x8xbf16, #tpu.memory_space<vmem>>, vector<1x8x8xbf16>
    %30 = vector.shape_cast %29 : vector<1x8x8xbf16> to vector<8x8xbf16>
    %cst_20 = arith.constant dense<0.000000e+00> : vector<8x288xf32>
    %31 = tpu.matmul %30, %28, %cst_20 {dimension_numbers = #tpu.dot_dimension_numbers<[1], [0], [0], [1], [0, 0, 1, 1], [], []>} : vector<8x8xbf16>, vector<8x288xbf16>, vector<8x288xf32> -> vector<8x288xf32>
    %32 = arith.addf %27, %31 : vector<8x288xf32>
    %33 = vector.extract_strided_slice %1 {offsets = [0, 36], sizes = [8, 288], strides = [1, 1]} : vector<8x326xbf16> to vector<8x288xbf16>
    %c6 = arith.constant 6 : index
    %c0_21 = arith.constant 0 : index
    %c0_22 = arith.constant 0 : index
    %34 = vector.load %arg2[%c6, %c0_21, %c0_22] : memref<9x8x8xbf16, #tpu.memory_space<vmem>>, vector<1x8x8xbf16>
    %35 = vector.shape_cast %34 : vector<1x8x8xbf16> to vector<8x8xbf16>
    %cst_23 = arith.constant dense<0.000000e+00> : vector<8x288xf32>
    %36 = tpu.matmul %35, %33, %cst_23 {dimension_numbers = #tpu.dot_dimension_numbers<[1], [0], [0], [1], [0, 0, 1, 1], [], []>} : vector<8x8xbf16>, vector<8x288xbf16>, vector<8x288xf32> -> vector<8x288xf32>
    %37 = arith.addf %32, %36 : vector<8x288xf32>
    %38 = vector.extract_strided_slice %1 {offsets = [0, 37], sizes = [8, 288], strides = [1, 1]} : vector<8x326xbf16> to vector<8x288xbf16>
    %c7 = arith.constant 7 : index
    %c0_24 = arith.constant 0 : index
    %c0_25 = arith.constant 0 : index
    %39 = vector.load %arg2[%c7, %c0_24, %c0_25] : memref<9x8x8xbf16, #tpu.memory_space<vmem>>, vector<1x8x8xbf16>
    %40 = vector.shape_cast %39 : vector<1x8x8xbf16> to vector<8x8xbf16>
    %cst_26 = arith.constant dense<0.000000e+00> : vector<8x288xf32>
    %41 = tpu.matmul %40, %38, %cst_26 {dimension_numbers = #tpu.dot_dimension_numbers<[1], [0], [0], [1], [0, 0, 1, 1], [], []>} : vector<8x8xbf16>, vector<8x288xbf16>, vector<8x288xf32> -> vector<8x288xf32>
    %42 = arith.addf %37, %41 : vector<8x288xf32>
    %43 = vector.extract_strided_slice %1 {offsets = [0, 38], sizes = [8, 288], strides = [1, 1]} : vector<8x326xbf16> to vector<8x288xbf16>
    %c8 = arith.constant 8 : index
    %c0_27 = arith.constant 0 : index
    %c0_28 = arith.constant 0 : index
    %44 = vector.load %arg2[%c8, %c0_27, %c0_28] : memref<9x8x8xbf16, #tpu.memory_space<vmem>>, vector<1x8x8xbf16>
    %45 = vector.shape_cast %44 : vector<1x8x8xbf16> to vector<8x8xbf16>
    %cst_29 = arith.constant dense<0.000000e+00> : vector<8x288xf32>
    %46 = tpu.matmul %45, %43, %cst_29 {dimension_numbers = #tpu.dot_dimension_numbers<[1], [0], [0], [1], [0, 0, 1, 1], [], []>} : vector<8x8xbf16>, vector<8x288xbf16>, vector<8x288xf32> -> vector<8x288xf32>
    %47 = arith.addf %42, %46 : vector<8x288xf32>
    %c0_30 = arith.constant 0 : index
    %c0_31 = arith.constant 0 : index
    %48 = vector.load %arg3[%c0_30, %c0_31] : memref<1x288xf32, #tpu.memory_space<vmem>>, vector<1x288xf32>
    %49 = vector.broadcast %48 : vector<1x288xf32> to vector<8x288xf32>
    %50 = arith.mulf %47, %49 : vector<8x288xf32>
    %cst_32 = arith.constant dense<0.000000e+00> : vector<8xf32>
    %51 = vector.multi_reduction <add>, %50, %cst_32 [1] : vector<8x288xf32> to vector<8xf32>
    %52 = vector.shape_cast %51 : vector<8xf32> to vector<8x1xf32>
    %53 = arith.mulf %50, %47 : vector<8x288xf32>
    %cst_33 = arith.constant dense<0.000000e+00> : vector<8xf32>
    %54 = vector.multi_reduction <add>, %53, %cst_33 [1] : vector<8x288xf32> to vector<8xf32>
    %55 = vector.shape_cast %54 : vector<8xf32> to vector<8x1xf32>
    %56 = tpu.iota {dimensions = array<i32: 1>} : vector<8x128xi32>
    %c0_i32 = arith.constant 0 : i32
    %57 = vector.broadcast %c0_i32 : i32 to vector<8x128xi32>
    %58 = arith.cmpi eq, %56, %57 : vector<8x128xi32>
    %c1_i32 = arith.constant 1 : i32
    %59 = vector.broadcast %c1_i32 : i32 to vector<8x128xi32>
    %60 = arith.cmpi eq, %56, %59 : vector<8x128xi32>
    %cst_34 = arith.constant 0.000000e+00 : f32
    %61 = vector.shape_cast %55 : vector<8x1xf32> to vector<8x1xf32>
    %62 = vector.broadcast %61 : vector<8x1xf32> to vector<8x128xf32>
    %63 = vector.broadcast %cst_34 : f32 to vector<8x128xf32>
    %64 = arith.select %60, %62, %63 : vector<8x128xi1>, vector<8x128xf32>
    %65 = vector.shape_cast %52 : vector<8x1xf32> to vector<8x1xf32>
    %66 = vector.broadcast %65 : vector<8x1xf32> to vector<8x128xf32>
    %67 = arith.select %58, %66, %64 : vector<8x128xi1>, vector<8x128xf32>
    %c0_35 = arith.constant 0 : index
    %c0_36 = arith.constant 0 : index
    %c0_37 = arith.constant 0 : index
    %68 = vector.load %arg4[%c0_35, %c0_36, %c0_37] : memref<1x8x128xf32, #tpu.memory_space<vmem>>, vector<1x8x128xf32>
    %69 = vector.shape_cast %68 : vector<1x8x128xf32> to vector<8x128xf32>
    %70 = vector.shape_cast %67 : vector<8x128xf32> to vector<1x8x128xf32>
    tpu.vector_store %arg4[%c0_35, %c0_36, %c0_37], %70 {strides = array<i32>} : memref<1x8x128xf32, #tpu.memory_space<vmem>>, vector<1x8x128xf32>,
    return
  }
  func.func @transform_0(%arg0: i32) -> (i32, i32, i32) {
    %c0_i32 = arith.constant 0 : i32
    %c0_i32_0 = arith.constant 0 : i32
    %c0_i32_1 = arith.constant 0 : i32
    return %arg0, %c0_i32, %c0_i32_0 : i32, i32, i32
  }
  func.func @transform_1(%arg0: i32) -> (i32, i32, i32) {
    %c0_i32 = arith.constant 0 : i32
    %c0_i32_0 = arith.constant 0 : i32
    %c0_i32_1 = arith.constant 0 : i32
    %c0_i32_2 = arith.constant 0 : i32
    return %c0_i32, %c0_i32_0, %c0_i32_1 : i32, i32, i32
  }
  func.func @transform_2(%arg0: i32) -> (i32, i32) {
    %c0_i32 = arith.constant 0 : i32
    %c0_i32_0 = arith.constant 0 : i32
    %c0_i32_1 = arith.constant 0 : i32
    return %c0_i32, %c0_i32_0 : i32, i32
  }
  func.func @transform_3(%arg0: i32) -> (i32, i32, i32) {
    %c0_i32 = arith.constant 0 : i32
    %c0_i32_0 = arith.constant 0 : i32
    %c0_i32_1 = arith.constant 0 : i32
    return %arg0, %c0_i32, %c0_i32_0 : i32, i32, i32
  }
}

</mosaic_0001>

<llo_original>
// kernel: tpu_custom_call.1
$region0: #{tpu_custom_call.1}
  #allocation0 [shape = 'u32[]', space=smem, size = 0x4, offset = 0x4, fixed_abs, tag = 'smem constant byte address 0x4 - core index']
  #allocation1 [shape = 'u32[144,128]{1,0:T(1,128)}', space=vmem, size = 0x12000, scoped, tag = 'internal scratch']
  %s0 = inlined_call_operand.vmem [shape: bf16[2,8,326], index: 0, kind: input, shape index: {}]
  %s1 = inlined_call_operand.vmem [shape: bf16[9,8,8], index: 1, kind: input, shape index: {}]
  %s2 = inlined_call_operand.vmem [shape: f32[1,288], index: 2, kind: input, shape index: {}]
  %s3 = inlined_call_operand.hbm [shape: f32[2,8,128], index: 3, kind: output, shape index: {}]
  %s4 = sld [smem:[#allocation0]]
  $region45: #{tpu_custom_call.1} parent=0
    _
  %s6 = ssub.s32 1, %s4
  %s7 = scalar_select 0, %s6, %s4
  $region1: #{tpu_custom_call.1} parent=0
    #allocation2 [shape = 'u8[8192]{0}', space=vmem, size = 0x2000, scoped, tag = 'output window, operand 0']
    #allocation3 [shape = 's32[2]{0}', space=sflag, size = 0x8, scoped, tag = 'scoped memory for tpu_custom_call.1']
    %8 = vsyncpa [#allocation3], 0
    %s9 = scalar_lea.sflag [#allocation3], 1
    %10 = vsyncpa %s9, 0
    loop: start=0, step=1, limit=4
    $region2: #{tpu_custom_call.1} parent=1 // loop_pre_header
      _
    $region3: #{tpu_custom_call.1} parent=1 // loop_header
      %s12 = sphi 0, %s16
      %p13 = scmp.ge.s32.totalorder %s12, 4
      %s22 = sphi 0, %s24
      %s25 = sphi 0, %s22
      %s26 = sphi 0, %s25
      %s42 = sphi 0, %s26
      %s46 = sphi 0, %s46
      %s48 = sphi 0, %s46
      %s49 = sphi 0, %s48
      %s63 = sphi 0, %s49
      %s67 = sphi 0, %s67
      %s69 = sphi 0, %s67
      %s70 = sphi 0, %s69
      %s84 = sphi 0, %s70
      %s90 = sphi 0, %s92
      %s93 = sphi 0, %s90
      %s94 = sphi 0, %s93
      %s110 = sphi 0, %s94
    $region4: #{tpu_custom_call.1} parent=1 // loop_header_branch
      %15 = sbr.rel (%p13) target = $region8
    $region5: #{tpu_custom_call.1} parent=1 // loop_body
      %s17 = ssub.s32 %s12, 1
      %s18 = ssub.s32 %s12, 2
      %s19 = sadd.s32 %s12, 1
      %s20 = ssub.s32 %s12, %s19
      %p21 = scmp.eq.s32.totalorder %s20, 0
      %s23 = sadd.s32 %s22, 1
      %s24 = scalar_select %p21, %s22, %s23
      %p27 = pneg %p21
      %p28 = scmp.eq.s32.totalorder %s12, 1
      %p29 = por %p27, %p28
      %p30 = scmp.ne.s32.totalorder %s22, %s25
      %p31 = scmp.eq.s32.totalorder %s12, 0
      %p32 = por %p30, %p31
      %p33 = scmp.ne.s32.totalorder %s22, %s25
      %p34 = scmp.eq.s32.totalorder %s17, 1
      %p35 = por %p33, %p34
      %p36 = scmp.ne.s32.totalorder %s25, %s26
      %p37 = scmp.eq.s32.totalorder %s17, 0
      %p38 = por %p36, %p37
      %p39 = scmp.ne.s32.totalorder %s25, %s26
      %p40 = scmp.eq.s32.totalorder %s18, 1
      %p41 = por %p39, %p40
      %p43 = scmp.ne.s32.totalorder %s26, %s42
      %p44 = scmp.eq.s32.totalorder %s18, 0
      %p45 = por %p43, %p44
      %s47 = sadd.s32 %s46, 1
      %p50 = scmp.eq.s32.totalorder %s12, 1
      %p51 = scmp.ne.s32.totalorder %s46, %s48
      %p52 = scmp.eq.s32.totalorder %s12, 0
      %p53 = por %p51, %p52
      %p54 = scmp.ne.s32.totalorder %s46, %s48
      %p55 = scmp.eq.s32.totalorder %s17, 1
      %p56 = por %p54, %p55
      %p57 = scmp.ne.s32.totalorder %s48, %s49
      %p58 = scmp.eq.s32.totalorder %s17, 0
      %p59 = por %p57, %p58
      %p60 = scmp.ne.s32.totalorder %s48, %s49
      %p61 = scmp.eq.s32.totalorder %s18, 1
      %p62 = por %p60, %p61
      %p64 = scmp.ne.s32.totalorder %s49, %s63
      %p65 = scmp.eq.s32.totalorder %s18, 0
      %p66 = por %p64, %p65
      %s68 = sadd.s32 %s67, 1
      %p71 = scmp.eq.s32.totalorder %s12, 1
      %p72 = scmp.ne.s32.totalorder %s67, %s69
      %p73 = scmp.eq.s32.totalorder %s12, 0
      %p74 = por %p72, %p73
      %p75 = scmp.ne.s32.totalorder %s67, %s69
      %p76 = scmp.eq.s32.totalorder %s17, 1
      %p77 = por %p75, %p76
      %p78 = scmp.ne.s32.totalorder %s69, %s70
      %p79 = scmp.eq.s32.totalorder %s17, 0
      %p80 = por %p78, %p79
      %p81 = scmp.ne.s32.totalorder %s69, %s70
      %p82 = scmp.eq.s32.totalorder %s18, 1
      %p83 = por %p81, %p82
      %p85 = scmp.ne.s32.totalorder %s70, %s84
      %p86 = scmp.eq.s32.totalorder %s18, 0
      %p87 = por %p85, %p86
      %s88 = ssub.s32 %s12, %s19
      %p89 = scmp.eq.s32.totalorder %s88, 0
      %s91 = sadd.s32 %s90, 1
      %s92 = scalar_select %p89, %s90, %s91
      %p95 = pneg %p89
      %p96 = scmp.eq.s32.totalorder %s12, 1
      %p97 = por %p95, %p96
      %p98 = scmp.ne.s32.totalorder %s90, %s93
      %p99 = scmp.eq.s32.totalorder %s12, 0
      %p100 = por %p98, %p99
      %p101 = scmp.ne.s32.totalorder %s90, %s93
      %p102 = scmp.eq.s32.totalorder %s17, 1
      %p103 = por %p101, %p102
      %p104 = scmp.ne.s32.totalorder %s93, %s94
      %p105 = scmp.eq.s32.totalorder %s17, 0
      %p106 = por %p104, %p105
      %p107 = scmp.ne.s32.totalorder %s93, %s94
      %p108 = scmp.eq.s32.totalorder %s18, 1
      %p109 = por %p107, %p108
      %p111 = scmp.ne.s32.totalorder %s94, %s110
      %p112 = scmp.eq.s32.totalorder %s18, 0
      %p113 = por %p111, %p112
      %p114 = scmp.le.s32.totalorder 1, %s12
      %p115 = scmp.lt.s32.totalorder %s12, 3
      %p116 = pnand %p114, %p115
      %p117 = pneg %p116
      // Predicated region
      $region9: #{tpu_custom_call.1} parent=5 // pred_check
        _
      $region10: #{tpu_custom_call.1} parent=5 // pred_check_branch
        %119 = sbr.rel (%p116) target = $region12
      $region11: #{tpu_custom_call.1} parent=5 // pred_region
        %s120 = ssub.s32 %s12, 1
        // Predicated region
        $region13: #{tpu_custom_call.1} parent=11 // pred_check
          %p121 = pneg %p59
        $region14: #{tpu_custom_call.1} parent=11 // pred_check_branch
          %123 = sbr.rel (%p121) target = $region16
        $region15: #{tpu_custom_call.1} parent=11 // pred_region
          _
        $region16: #{tpu_custom_call.1} parent=11 // pred_fallthru
          _
        // Predicated region
        $region17: #{tpu_custom_call.1} parent=11 // pred_check
          %p124 = pneg %p80
        $region18: #{tpu_custom_call.1} parent=11 // pred_check_branch
          %126 = sbr.rel (%p124) target = $region20
        $region19: #{tpu_custom_call.1} parent=11 // pred_region
          _
        $region20: #{tpu_custom_call.1} parent=11 // pred_fallthru
          _
      $region12: #{tpu_custom_call.1} parent=5 // pred_fallthru
        _
      %p127 = scmp.lt.s32.totalorder %s12, 2
      // Predicated region
      $region21: #{tpu_custom_call.1} parent=5 // pred_check
        %p128 = pneg %p127
      $region22: #{tpu_custom_call.1} parent=5 // pred_check_branch
        %130 = sbr.rel (%p128) target = $region24
      $region23: #{tpu_custom_call.1} parent=5 // pred_region
        // Predicated region
        $region25: #{tpu_custom_call.1} parent=23 // pred_check
          %p131 = pneg %p32
        $region26: #{tpu_custom_call.1} parent=23 // pred_check_branch
          %133 = sbr.rel (%p131) target = $region28
        $region27: #{tpu_custom_call.1} parent=23 // pred_region
          %p134 = scmp.lt.s32.totalorder %s12, 1
          %s135 = scalar_select %p134, %s12, 1
          %s136 = smul.addr %s135, 3
          %s137 = smul.addr %s136, 4
          %s138 = scalar_lea.vmem %s0, %s137
        $region28: #{tpu_custom_call.1} parent=23 // pred_fallthru
          _
      $region24: #{tpu_custom_call.1} parent=5 // pred_fallthru
        _
      %p139 = scmp.le.s32.totalorder 1, %s12
      %p140 = scmp.lt.s32.totalorder %s12, 3
      %p141 = pnand %p139, %p140
      %p142 = pneg %p141
      // Predicated region
      $region29: #{tpu_custom_call.1} parent=5 // pred_check
        _
      $region30: #{tpu_custom_call.1} parent=5 // pred_check_branch
        %144 = sbr.rel (%p141) target = $region32
      $region31: #{tpu_custom_call.1} parent=5 // pred_region
        %s145 = ssub.s32 %s12, 1
        %p146 = scmp.lt.s32.totalorder %s17, 1
        %s147 = scalar_select %p146, %s17, 1
        %s148 = smul.addr %s147, 3
        %s149 = smul.addr %s148, 4
        %s150 = scalar_lea.vmem %s0, %s149
        %p151 = pneg %p38
        %p152 = pneg %p35
        %p153 = pneg %p59
        %p154 = pneg %p56
        %p155 = pneg %p80
        %p156 = pneg %p77
        %p157 = pneg %p106
        %p158 = pneg %p103
        %s159 = sand.u32 %s93, 1
        %s160 = scalar_lea.sflag [#allocation3], %s159
        %s161 = sand.u32 %s93, 1
        %s162 = smul.addr %s161, 8
        %s163 = scalar_lea.vmem [#allocation2], %s162
        %p164 = scmp.lt.s32.totalorder %s17, 1
        %s165 = scalar_select %p164, %s17, 1
        %s166 = smul.addr %s165, 3
        %s167 = smul.addr %s166, 4
        %s168 = scalar_lea.vmem %s0, %s167
        %v170 = vld [vmem:[%s168] sm:$0xff]
        %v171 = vld [vmem:[%s168 + $0x8] sm:$0xf]
        %v172 = vld [vmem:[%s1] sm:$0xf]
        %s173 = scalar_lea.vmem %s1, 4
        %v174 = vld [vmem:[%s173] sm:$0xf]
        %v177 = vunpack.c.l.b16 %v170
        %v178 = vunpack.c.h.b16 %v170
        %v179 = vunpack.c.l.b16 %v171
        %v180 = vpack.c.b16 %v177, %v177
        %v181 = vpack.c.b16 %v178, %v178
        %v182 = vpack.c.b16 %v179, %v179
        %183 = vrot.lane.b32.xlu0 %v180, 127
        %v184 = vpop.permute.xlu0 %183
        %185 = vrot.lane.b32.xlu0 %v181, 127
        %v186 = vpop.permute.xlu0 %185
        %187 = vrot.lane.b32.xlu0 %v182, 127
        %v188 = vpop.permute.xlu0 %187
        %vm189 = vcmask 1039360
        %v190 = vsel %vm189, %v184, %v186
        %v191 = vsel %vm189, %v186, %v188
        %vm192 = vcmask 64512
        %v194 = vsel %vm192, %v174, 0
        %vm196 = vcmask 1043456
        %v198 = vsel %vm196, %v190, 0
        %v201 = vsel %vm196, %v191, 0
        %v204 = vsel %vm196, %v188, 0
        %206 = vmatprep.subr.bf16.mxu0 %v201
        %207 = vmatpush1.bf16.msra.mxu0 %v198
        %208 = vmatprep.subr.bf16.mxu0 0
        %209 = vmatpush1.bf16.msra.mxu0 0
        %210 = vmatprep.subr.bf16.mxu0 0
        %211 = vmatpush1.bf16.msra.mxu0 0
        %212 = vmatprep.subr.bf16.mxu0 0
        %213 = vmatpush1.bf16.msra.mxu0 0
        %214 = vmatprep.subr.bf16.mxu0 0
        %215 = vmatpush1.bf16.msra.mxu0 0
        %216 = vmatprep.subr.bf16.mxu0 0
        %217 = vmatpush1.bf16.msra.mxu0 0
        %218 = vmatprep.subr.bf16.mxu0 0
        %219 = vmatpush1.bf16.msra.mxu0 0
        %220 = vmatprep.subr.bf16.mxu0 0
        %221 = vmatpush1.bf16.msra.mxu0 0
        %222 = vmatprep.subr.bf16.mxu0 0
        %223 = vmatpush1.bf16.msra.mxu0 0
        %224 = vmatprep.subr.bf16.mxu0 0
        %225 = vmatpush1.bf16.msra.mxu0 0
        %226 = vmatprep.subr.bf16.mxu0 0
        %227 = vmatpush1.bf16.msra.mxu0 0
        %228 = vmatprep.subr.bf16.mxu0 0
        %229 = vmatpush1.bf16.msra.mxu0 0
        %230 = vmatprep.subr.bf16.mxu0 0
        %231 = vmatpush1.bf16.msra.mxu0 0
        %232 = vmatprep.subr.bf16.mxu0 0
        %233 = vmatpush1.bf16.msra.mxu0 0
        %234 = vmatprep.subr.bf16.mxu0 0
        %235 = vmatpush1.bf16.msra.mxu0 0
        %236 = vmatprep.subr.bf16.mxu0 0
        %237 = vmatpush1.bf16.msra.mxu0 0
        %238 = vmatprep.mubr.bf16.mxu0 0
        %239 = vmatmul.mubr.bf16.gmra.mrb[0].mxu0 %v194
        %v240 = vpop.f32.mrb[0].mxu0
        %v241 = vadd.f32 0.0, %v240
        %v242 = vpop.f32.mrb[0].mxu0
        %v243 = vadd.f32 0.0, %v242
        %v244 = vpop.f32.mrb[0].mxu0
        %v245 = vpop.f32.mrb[0].mxu0
        %246 = vdwg.mxu0
        %247 = vmatprep.subr.bf16.mxu0 0
        %248 = vmatpush1.bf16.msra.mxu0 %v204
        %249 = vmatprep.subr.bf16.mxu0 0
        %250 = vmatpush1.bf16.msra.mxu0 0
        %251 = vmatprep.subr.bf16.mxu0 0
        %252 = vmatpush1.bf16.msra.mxu0 0
        %253 = vmatprep.subr.bf16.mxu0 0
        %254 = vmatpush1.bf16.msra.mxu0 0
        %255 = vmatprep.subr.bf16.mxu0 0
        %256 = vmatpush1.bf16.msra.mxu0 0
        %257 = vmatprep.subr.bf16.mxu0 0
        %258 = vmatpush1.bf16.msra.mxu0 0
        %259 = vmatprep.subr.bf16.mxu0 0
        %260 = vmatpush1.bf16.msra.mxu0 0
        %261 = vmatprep.subr.bf16.mxu0 0
        %262 = vmatpush1.bf16.msra.mxu0 0
        %263 = vmatprep.subr.bf16.mxu0 0
        %264 = vmatpush1.bf16.msra.mxu0 0
        %265 = vmatprep.subr.bf16.mxu0 0
        %266 = vmatpush1.bf16.msra.mxu0 0
        %267 = vmatprep.subr.bf16.mxu0 0
        %268 = vmatpush1.bf16.msra.mxu0 0
        %269 = vmatprep.subr.bf16.mxu0 0
        %270 = vmatpush1.bf16.msra.mxu0 0
        %271 = vmatprep.subr.bf16.mxu0 0
        %272 = vmatpush1.bf16.msra.mxu0 0
        %273 = vmatprep.subr.bf16.mxu0 0
        %274 = vmatpush1.bf16.msra.mxu0 0
        %275 = vmatprep.subr.bf16.mxu0 0
        %276 = vmatpush1.bf16.msra.mxu0 0
        %277 = vmatprep.subr.bf16.mxu0 0
        %278 = vmatpush1.bf16.msra.mxu0 0
        %279 = vmatprep.mubr.bf16.mxu0 0
        %280 = vmatmul.mubr.bf16.gmra.mrb[0].mxu0 %v194
        %v281 = vpop.f32.mrb[0].mxu0
        %v282 = vadd.f32 0.0, %v281
        %v283 = vpop.f32.mrb[0].mxu0
        %v284 = vpop.f32.mrb[0].mxu0
        %v285 = vpop.f32.mrb[0].mxu0
        %286 = vdwg.mxu0
        %v288 = vsel %vm192, %v172, 0
        %v291 = vsel %vm196, %v180, 0
        %v294 = vsel %vm196, %v181, 0
        %v297 = vsel %vm196, %v182, 0
        %299 = vmatprep.subr.bf16.mxu0 %v294
        %300 = vmatpush1.bf16.msra.mxu0 %v291
        %301 = vmatprep.subr.bf16.mxu0 0
        %302 = vmatpush1.bf16.msra.mxu0 0
        %303 = vmatprep.subr.bf16.mxu0 0
        %304 = vmatpush1.bf16.msra.mxu0 0
        %305 = vmatprep.subr.bf16.mxu0 0
        %306 = vmatpush1.bf16.msra.mxu0 0
        %307 = vmatprep.subr.bf16.mxu0 0
        %308 = vmatpush1.bf16.msra.mxu0 0
        %309 = vmatprep.subr.bf16.mxu0 0
        %310 = vmatpush1.bf16.msra.mxu0 0
        %311 = vmatprep.subr.bf16.mxu0 0
        %312 = vmatpush1.bf16.msra.mxu0 0
        %313 = vmatprep.subr.bf16.mxu0 0
        %314 = vmatpush1.bf16.msra.mxu0 0
        %315 = vmatprep.subr.bf16.mxu0 0
        %316 = vmatpush1.bf16.msra.mxu0 0
        %317 = vmatprep.subr.bf16.mxu0 0
        %318 = vmatpush1.bf16.msra.mxu0 0
        %319 = vmatprep.subr.bf16.mxu0 0
        %320 = vmatpush1.bf16.msra.mxu0 0
        %321 = vmatprep.subr.bf16.mxu0 0
        %322 = vmatpush1.bf16.msra.mxu0 0
        %323 = vmatprep.subr.bf16.mxu0 0
        %324 = vmatpush1.bf16.msra.mxu0 0
        %325 = vmatprep.subr.bf16.mxu0 0
        %326 = vmatpush1.bf16.msra.mxu0 0
        %327 = vmatprep.subr.bf16.mxu0 0
        %328 = vmatpush1.bf16.msra.mxu0 0
        %329 = vmatprep.subr.bf16.mxu0 0
        %330 = vmatpush1.bf16.msra.mxu0 0
        %331 = vmatprep.mubr.bf16.mxu0 0
        %332 = vmatmul.mubr.bf16.gmra.mrb[0].mxu0 %v288
        %v333 = vpop.f32.mrb[0].mxu0
        %v334 = vadd.f32 %v241, %v333
        %v335 = vpop.f32.mrb[0].mxu0
        %v336 = vadd.f32 %v243, %v335
        %v337 = vpop.f32.mrb[0].mxu0
        %v338 = vpop.f32.mrb[0].mxu0
        %339 = vdwg.mxu0
        %340 = vmatprep.subr.bf16.mxu0 0
        %341 = vmatpush1.bf16.msra.mxu0 %v297
        %342 = vmatprep.subr.bf16.mxu0 0
        %343 = vmatpush1.bf16.msra.mxu0 0
        %344 = vmatprep.subr.bf16.mxu0 0
        %345 = vmatpush1.bf16.msra.mxu0 0
        %346 = vmatprep.subr.bf16.mxu0 0
        %347 = vmatpush1.bf16.msra.mxu0 0
        %348 = vmatprep.subr.bf16.mxu0 0
        %349 = vmatpush1.bf16.msra.mxu0 0
        %350 = vmatprep.subr.bf16.mxu0 0
        %351 = vmatpush1.bf16.msra.mxu0 0
        %352 = vmatprep.subr.bf16.mxu0 0
        %353 = vmatpush1.bf16.msra.mxu0 0
        %354 = vmatprep.subr.bf16.mxu0 0
        %355 = vmatpush1.bf16.msra.mxu0 0
        %356 = vmatprep.subr.bf16.mxu0 0
        %357 = vmatpush1.bf16.msra.mxu0 0
        %358 = vmatprep.subr.bf16.mxu0 0
        %359 = vmatpush1.bf16.msra.mxu0 0
        %360 = vmatprep.subr.bf16.mxu0 0
        %361 = vmatpush1.bf16.msra.mxu0 0
        %362 = vmatprep.subr.bf16.mxu0 0
        %363 = vmatpush1.bf16.msra.mxu0 0
        %364 = vmatprep.subr.bf16.mxu0 0
        %365 = vmatpush1.bf16.msra.mxu0 0
        %366 = vmatprep.subr.bf16.mxu0 0
        %367 = vmatpush1.bf16.msra.mxu0 0
        %368 = vmatprep.subr.bf16.mxu0 0
        %369 = vmatpush1.bf16.msra.mxu0 0
        %370 = vmatprep.subr.bf16.mxu0 0
        %371 = vmatpush1.bf16.msra.mxu0 0
        %372 = vmatprep.mubr.bf16.mxu0 0
        %373 = vmatmul.mubr.bf16.gmra.mrb[0].mxu0 %v288
        %v374 = vpop.f32.mrb[0].mxu0
        %v375 = vadd.f32 %v282, %v374
        %v376 = vpop.f32.mrb[0].mxu0
        %v377 = vpop.f32.mrb[0].mxu0
        %v378 = vpop.f32.mrb[0].mxu0
        %379 = vdwg.mxu0
        %s380 = scalar_lea.vmem %s1, 8
        %v381 = vld [vmem:[%s380] sm:$0xf]
        %382 = vrot.lane.b32.xlu0 %v180, 126
        %v383 = vpop.permute.xlu0 %382
        %384 = vrot.lane.b32.xlu0 %v181, 126
        %v385 = vpop.permute.xlu0 %384
        %386 = vrot.lane.b32.xlu0 %v182, 126
        %v387 = vpop.permute.xlu0 %386
        %vm388 = vcmask 1031168
        %v389 = vsel %vm388, %v383, %v385
        %v390 = vsel %vm388, %v385, %v387
        %v392 = vsel %vm192, %v381, 0
        %v395 = vsel %vm196, %v389, 0
        %v398 = vsel %vm196, %v390, 0
        %v401 = vsel %vm196, %v387, 0
        %403 = vmatprep.subr.bf16.mxu0 %v398
        %404 = vmatpush1.bf16.msra.mxu0 %v395
        %405 = vmatprep.subr.bf16.mxu0 0
        %406 = vmatpush1.bf16.msra.mxu0 0
        %407 = vmatprep.subr.bf16.mxu0 0
        %408 = vmatpush1.bf16.msra.mxu0 0
        %409 = vmatprep.subr.bf16.mxu0 0
        %410 = vmatpush1.bf16.msra.mxu0 0
        %411 = vmatprep.subr.bf16.mxu0 0
        %412 = vmatpush1.bf16.msra.mxu0 0
        %413 = vmatprep.subr.bf16.mxu0 0
        %414 = vmatpush1.bf16.msra.mxu0 0
        %415 = vmatprep.subr.bf16.mxu0 0
        %416 = vmatpush1.bf16.msra.mxu0 0
        %417 = vmatprep.subr.bf16.mxu0 0
        %418 = vmatpush1.bf16.msra.mxu0 0
        %419 = vmatprep.subr.bf16.mxu0 0
        %420 = vmatpush1.bf16.msra.mxu0 0
        %421 = vmatprep.subr.bf16.mxu0 0
        %422 = vmatpush1.bf16.msra.mxu0 0
        %423 = vmatprep.subr.bf16.mxu0 0
        %424 = vmatpush1.bf16.msra.mxu0 0
        %425 = vmatprep.subr.bf16.mxu0 0
        %426 = vmatpush1.bf16.msra.mxu0 0
        %427 = vmatprep.subr.bf16.mxu0 0
        %428 = vmatpush1.bf16.msra.mxu0 0
        %429 = vmatprep.subr.bf16.mxu0 0
        %430 = vmatpush1.bf16.msra.mxu0 0
        %431 = vmatprep.subr.bf16.mxu0 0
        %432 = vmatpush1.bf16.msra.mxu0 0
        %433 = vmatprep.subr.bf16.mxu0 0
        %434 = vmatpush1.bf16.msra.mxu0 0
        %435 = vmatprep.mubr.bf16.mxu0 0
        %436 = vmatmul.mubr.bf16.gmra.mrb[0].mxu0 %v392
        %v437 = vpop.f32.mrb[0].mxu0
        %v438 = vadd.f32 0.0, %v437
        %v439 = vpop.f32.mrb[0].mxu0
        %v440 = vadd.f32 0.0, %v439
        %v441 = vpop.f32.mrb[0].mxu0
        %v442 = vpop.f32.mrb[0].mxu0
        %443 = vdwg.mxu0
        %444 = vmatprep.subr.bf16.mxu0 0
        %445 = vmatpush1.bf16.msra.mxu0 %v401
        %446 = vmatprep.subr.bf16.mxu0 0
        %447 = vmatpush1.bf16.msra.mxu0 0
        %448 = vmatprep.subr.bf16.mxu0 0
        %449 = vmatpush1.bf16.msra.mxu0 0
        %450 = vmatprep.subr.bf16.mxu0 0
        %451 = vmatpush1.bf16.msra.mxu0 0
        %452 = vmatprep.subr.bf16.mxu0 0
        %453 = vmatpush1.bf16.msra.mxu0 0
        %454 = vmatprep.subr.bf16.mxu0 0
        %455 = vmatpush1.bf16.msra.mxu0 0
        %456 = vmatprep.subr.bf16.mxu0 0
        %457 = vmatpush1.bf16.msra.mxu0 0
        %458 = vmatprep.subr.bf16.mxu0 0
        %459 = vmatpush1.bf16.msra.mxu0 0
        %460 = vmatprep.subr.bf16.mxu0 0
        %461 = vmatpush1.bf16.msra.mxu0 0
        %462 = vmatprep.subr.bf16.mxu0 0
        %463 = vmatpush1.bf16.msra.mxu0 0
        %464 = vmatprep.subr.bf16.mxu0 0
        %465 = vmatpush1.bf16.msra.mxu0 0
        %466 = vmatprep.subr.bf16.mxu0 0
        %467 = vmatpush1.bf16.msra.mxu0 0
        %468 = vmatprep.subr.bf16.mxu0 0
        %469 = vmatpush1.bf16.msra.mxu0 0
        %470 = vmatprep.subr.bf16.mxu0 0
        %471 = vmatpush1.bf16.msra.mxu0 0
        %472 = vmatprep.subr.bf16.mxu0 0
        %473 = vmatpush1.bf16.msra.mxu0 0
        %474 = vmatprep.subr.bf16.mxu0 0
        %475 = vmatpush1.bf16.msra.mxu0 0
        %476 = vmatprep.mubr.bf16.mxu0 0
        %477 = vmatmul.mubr.bf16.gmra.mrb[0].mxu0 %v392
        %v478 = vpop.f32.mrb[0].mxu0
        %v479 = vadd.f32 0.0, %v478
        %v480 = vpop.f32.mrb[0].mxu0
        %v481 = vpop.f32.mrb[0].mxu0
        %v482 = vpop.f32.mrb[0].mxu0
        %483 = vdwg.mxu0
        %v484 = vadd.f32 %v334, %v438
        %v485 = vadd.f32 %v336, %v440
        %v486 = vadd.f32 %v375, %v479
        %s487 = scalar_lea.vmem %s1, 12
        %v488 = vld [vmem:[%s487] sm:$0xf]
        %489 = vrot.lane.b32.xlu0 %v180, 110
        %v490 = vpop.permute.xlu0 %489
        %491 = vrot.lane.b32.xlu0 %v181, 110
        %v492 = vpop.permute.xlu0 %491
        %493 = vrot.lane.b32.xlu0 %v182, 110
        %v494 = vpop.permute.xlu0 %493
        %vm495 = vcmask 900096
        %v496 = vsel %vm495, %v490, %v492
        %v497 = vsel %vm495, %v492, %v494
        %v499 = vsel %vm192, %v488, 0
        %v502 = vsel %vm196, %v496, 0
        %v505 = vsel %vm196, %v497, 0
        %v508 = vsel %vm196, %v494, 0
        %510 = vmatprep.subr.bf16.mxu0 %v505
        %511 = vmatpush1.bf16.msra.mxu0 %v502
        %512 = vmatprep.subr.bf16.mxu0 0
        %513 = vmatpush1.bf16.msra.mxu0 0
        %514 = vmatprep.subr.bf16.mxu0 0
        %515 = vmatpush1.bf16.msra.mxu0 0
        %516 = vmatprep.subr.bf16.mxu0 0
        %517 = vmatpush1.bf16.msra.mxu0 0
        %518 = vmatprep.subr.bf16.mxu0 0
        %519 = vmatpush1.bf16.msra.mxu0 0
        %520 = vmatprep.subr.bf16.mxu0 0
        %521 = vmatpush1.bf16.msra.mxu0 0
        %522 = vmatprep.subr.bf16.mxu0 0
        %523 = vmatpush1.bf16.msra.mxu0 0
        %524 = vmatprep.subr.bf16.mxu0 0
        %525 = vmatpush1.bf16.msra.mxu0 0
        %526 = vmatprep.subr.bf16.mxu0 0
        %527 = vmatpush1.bf16.msra.mxu0 0
        %528 = vmatprep.subr.bf16.mxu0 0
        %529 = vmatpush1.bf16.msra.mxu0 0
        %530 = vmatprep.subr.bf16.mxu0 0
        %531 = vmatpush1.bf16.msra.mxu0 0
        %532 = vmatprep.subr.bf16.mxu0 0
        %533 = vmatpush1.bf16.msra.mxu0 0
        %534 = vmatprep.subr.bf16.mxu0 0
        %535 = vmatpush1.bf16.msra.mxu0 0
        %536 = vmatprep.subr.bf16.mxu0 0
        %537 = vmatpush1.bf16.msra.mxu0 0
        %538 = vmatprep.subr.bf16.mxu0 0
        %539 = vmatpush1.bf16.msra.mxu0 0
        %540 = vmatprep.subr.bf16.mxu0 0
        %541 = vmatpush1.bf16.msra.mxu0 0
        %542 = vmatprep.mubr.bf16.mxu0 0
        %543 = vmatmul.mubr.bf16.gmra.mrb[0].mxu0 %v499
        %v544 = vpop.f32.mrb[0].mxu0
        %v545 = vadd.f32 0.0, %v544
        %v546 = vpop.f32.mrb[0].mxu0
        %v547 = vadd.f32 0.0, %v546
        %v548 = vpop.f32.mrb[0].mxu0
        %v549 = vpop.f32.mrb[0].mxu0
        %550 = vdwg.mxu0
        %551 = vmatprep.subr.bf16.mxu0 0
        %552 = vmatpush1.bf16.msra.mxu0 %v508
        %553 = vmatprep.subr.bf16.mxu0 0
        %554 = vmatpush1.bf16.msra.mxu0 0
        %555 = vmatprep.subr.bf16.mxu0 0
        %556 = vmatpush1.bf16.msra.mxu0 0
        %557 = vmatprep.subr.bf16.mxu0 0
        %558 = vmatpush1.bf16.msra.mxu0 0
        %559 = vmatprep.subr.bf16.mxu0 0
        %560 = vmatpush1.bf16.msra.mxu0 0
        %561 = vmatprep.subr.bf16.mxu0 0
        %562 = vmatpush1.bf16.msra.mxu0 0
        %563 = vmatprep.subr.bf16.mxu0 0
        %564 = vmatpush1.bf16.msra.mxu0 0
        %565 = vmatprep.subr.bf16.mxu0 0
        %566 = vmatpush1.bf16.msra.mxu0 0
        %567 = vmatprep.subr.bf16.mxu0 0
        %568 = vmatpush1.bf16.msra.mxu0 0
        %569 = vmatprep.subr.bf16.mxu0 0
        %570 = vmatpush1.bf16.msra.mxu0 0
        %571 = vmatprep.subr.bf16.mxu0 0
        %572 = vmatpush1.bf16.msra.mxu0 0
        %573 = vmatprep.subr.bf16.mxu0 0
        %574 = vmatpush1.bf16.msra.mxu0 0
        %575 = vmatprep.subr.bf16.mxu0 0
        %576 = vmatpush1.bf16.msra.mxu0 0
        %577 = vmatprep.subr.bf16.mxu0 0
        %578 = vmatpush1.bf16.msra.mxu0 0
        %579 = vmatprep.subr.bf16.mxu0 0
        %580 = vmatpush1.bf16.msra.mxu0 0
        %581 = vmatprep.subr.bf16.mxu0 0
        %582 = vmatpush1.bf16.msra.mxu0 0
        %583 = vmatprep.mubr.bf16.mxu0 0
        %584 = vmatmul.mubr.bf16.gmra.mrb[0].mxu0 %v499
        %v585 = vpop.f32.mrb[0].mxu0
        %v586 = vadd.f32 0.0, %v585
        %v587 = vpop.f32.mrb[0].mxu0
        %v588 = vpop.f32.mrb[0].mxu0
        %v589 = vpop.f32.mrb[0].mxu0
        %590 = vdwg.mxu0
        %v591 = vadd.f32 %v484, %v545
        %v592 = vadd.f32 %v485, %v547
        %v593 = vadd.f32 %v486, %v586
        %s594 = scalar_lea.vmem %s1, 16
        %v595 = vld [vmem:[%s594] sm:$0xf]
        %596 = vrot.lane.b32.xlu0 %v180, 109
        %v597 = vpop.permute.xlu0 %596
        %598 = vrot.lane.b32.xlu0 %v181, 109
        %v599 = vpop.permute.xlu0 %598
        %600 = vrot.lane.b32.xlu0 %v182, 109
        %v601 = vpop.permute.xlu0 %600
        %vm602 = vcmask 891904
        %v603 = vsel %vm602, %v597, %v599
        %v604 = vsel %vm602, %v599, %v601
        %v606 = vsel %vm192, %v595, 0
        %v609 = vsel %vm196, %v603, 0
        %v612 = vsel %vm196, %v604, 0
        %v615 = vsel %vm196, %v601, 0
        %617 = vmatprep.subr.bf16.mxu0 %v612
        %618 = vmatpush1.bf16.msra.mxu0 %v609
        %619 = vmatprep.subr.bf16.mxu0 0
        %620 = vmatpush1.bf16.msra.mxu0 0
        %621 = vmatprep.subr.bf16.mxu0 0
        %622 = vmatpush1.bf16.msra.mxu0 0
        %623 = vmatprep.subr.bf16.mxu0 0
        %624 = vmatpush1.bf16.msra.mxu0 0
        %625 = vmatprep.subr.bf16.mxu0 0
        %626 = vmatpush1.bf16.msra.mxu0 0
        %627 = vmatprep.subr.bf16.mxu0 0
        %628 = vmatpush1.bf16.msra.mxu0 0
        %629 = vmatprep.subr.bf16.mxu0 0
        %630 = vmatpush1.bf16.msra.mxu0 0
        %631 = vmatprep.subr.bf16.mxu0 0
        %632 = vmatpush1.bf16.msra.mxu0 0
        %633 = vmatprep.subr.bf16.mxu0 0
        %634 = vmatpush1.bf16.msra.mxu0 0
        %635 = vmatprep.subr.bf16.mxu0 0
        %636 = vmatpush1.bf16.msra.mxu0 0
        %637 = vmatprep.subr.bf16.mxu0 0
        %638 = vmatpush1.bf16.msra.mxu0 0
        %639 = vmatprep.subr.bf16.mxu0 0
        %640 = vmatpush1.bf16.msra.mxu0 0
        %641 = vmatprep.subr.bf16.mxu0 0
        %642 = vmatpush1.bf16.msra.mxu0 0
        %643 = vmatprep.subr.bf16.mxu0 0
        %644 = vmatpush1.bf16.msra.mxu0 0
        %645 = vmatprep.subr.bf16.mxu0 0
        %646 = vmatpush1.bf16.msra.mxu0 0
        %647 = vmatprep.subr.bf16.mxu0 0
        %648 = vmatpush1.bf16.msra.mxu0 0
        %649 = vmatprep.mubr.bf16.mxu0 0
        %650 = vmatmul.mubr.bf16.gmra.mrb[0].mxu0 %v606
        %v651 = vpop.f32.mrb[0].mxu0
        %v652 = vadd.f32 0.0, %v651
        %v653 = vpop.f32.mrb[0].mxu0
        %v654 = vadd.f32 0.0, %v653
        %v655 = vpop.f32.mrb[0].mxu0
        %v656 = vpop.f32.mrb[0].mxu0
        %657 = vdwg.mxu0
        %658 = vmatprep.subr.bf16.mxu0 0
        %659 = vmatpush1.bf16.msra.mxu0 %v615
        %660 = vmatprep.subr.bf16.mxu0 0
        %661 = vmatpush1.bf16.msra.mxu0 0
        %662 = vmatprep.subr.bf16.mxu0 0
        %663 = vmatpush1.bf16.msra.mxu0 0
        %664 = vmatprep.subr.bf16.mxu0 0
        %665 = vmatpush1.bf16.msra.mxu0 0
        %666 = vmatprep.subr.bf16.mxu0 0
        %667 = vmatpush1.bf16.msra.mxu0 0
        %668 = vmatprep.subr.bf16.mxu0 0
        %669 = vmatpush1.bf16.msra.mxu0 0
        %670 = vmatprep.subr.bf16.mxu0 0
        %671 = vmatpush1.bf16.msra.mxu0 0
        %672 = vmatprep.subr.bf16.mxu0 0
        %673 = vmatpush1.bf16.msra.mxu0 0
        %674 = vmatprep.subr.bf16.mxu0 0
        %675 = vmatpush1.bf16.msra.mxu0 0
        %676 = vmatprep.subr.bf16.mxu0 0
        %677 = vmatpush1.bf16.msra.mxu0 0
        %678 = vmatprep.subr.bf16.mxu0 0
        %679 = vmatpush1.bf16.msra.mxu0 0
        %680 = vmatprep.subr.bf16.mxu0 0
        %681 = vmatpush1.bf16.msra.mxu0 0
        %682 = vmatprep.subr.bf16.mxu0 0
        %683 = vmatpush1.bf16.msra.mxu0 0
        %684 = vmatprep.subr.bf16.mxu0 0
        %685 = vmatpush1.bf16.msra.mxu0 0
        %686 = vmatprep.subr.bf16.mxu0 0
        %687 = vmatpush1.bf16.msra.mxu0 0
        %688 = vmatprep.subr.bf16.mxu0 0
        %689 = vmatpush1.bf16.msra.mxu0 0
        %690 = vmatprep.mubr.bf16.mxu0 0
        %691 = vmatmul.mubr.bf16.gmra.mrb[0].mxu0 %v606
        %v692 = vpop.f32.mrb[0].mxu0
        %v693 = vadd.f32 0.0, %v692
        %v694 = vpop.f32.mrb[0].mxu0
        %v695 = vpop.f32.mrb[0].mxu0
        %v696 = vpop.f32.mrb[0].mxu0
        %697 = vdwg.mxu0
        %v698 = vadd.f32 %v591, %v652
        %v699 = vadd.f32 %v592, %v654
        %v700 = vadd.f32 %v593, %v693
        %s701 = scalar_lea.vmem %s1, 20
        %v702 = vld [vmem:[%s701] sm:$0xf]
        %703 = vrot.lane.b32.xlu0 %v180, 108
        %v704 = vpop.permute.xlu0 %703
        %705 = vrot.lane.b32.xlu0 %v181, 108
        %v706 = vpop.permute.xlu0 %705
        %707 = vrot.lane.b32.xlu0 %v182, 108
        %v708 = vpop.permute.xlu0 %707
        %vm709 = vcmask 883712
        %v710 = vsel %vm709, %v704, %v706
        %v711 = vsel %vm709, %v706, %v708
        %v713 = vsel %vm192, %v702, 0
        %v716 = vsel %vm196, %v710, 0
        %v719 = vsel %vm196, %v711, 0
        %v722 = vsel %vm196, %v708, 0
        %724 = vmatprep.subr.bf16.mxu0 %v719
        %725 = vmatpush1.bf16.msra.mxu0 %v716
        %726 = vmatprep.subr.bf16.mxu0 0
        %727 = vmatpush1.bf16.msra.mxu0 0
        %728 = vmatprep.subr.bf16.mxu0 0
        %729 = vmatpush1.bf16.msra.mxu0 0
        %730 = vmatprep.subr.bf16.mxu0 0
        %731 = vmatpush1.bf16.msra.mxu0 0
        %732 = vmatprep.subr.bf16.mxu0 0
        %733 = vmatpush1.bf16.msra.mxu0 0
        %734 = vmatprep.subr.bf16.mxu0 0
        %735 = vmatpush1.bf16.msra.mxu0 0
        %736 = vmatprep.subr.bf16.mxu0 0
        %737 = vmatpush1.bf16.msra.mxu0 0
        %738 = vmatprep.subr.bf16.mxu0 0
        %739 = vmatpush1.bf16.msra.mxu0 0
        %740 = vmatprep.subr.bf16.mxu0 0
        %741 = vmatpush1.bf16.msra.mxu0 0
        %742 = vmatprep.subr.bf16.mxu0 0
        %743 = vmatpush1.bf16.msra.mxu0 0
        %744 = vmatprep.subr.bf16.mxu0 0
        %745 = vmatpush1.bf16.msra.mxu0 0
        %746 = vmatprep.subr.bf16.mxu0 0
        %747 = vmatpush1.bf16.msra.mxu0 0
        %748 = vmatprep.subr.bf16.mxu0 0
        %749 = vmatpush1.bf16.msra.mxu0 0
        %750 = vmatprep.subr.bf16.mxu0 0
        %751 = vmatpush1.bf16.msra.mxu0 0
        %752 = vmatprep.subr.bf16.mxu0 0
        %753 = vmatpush1.bf16.msra.mxu0 0
        %754 = vmatprep.subr.bf16.mxu0 0
        %755 = vmatpush1.bf16.msra.mxu0 0
        %756 = vmatprep.mubr.bf16.mxu0 0
        %757 = vmatmul.mubr.bf16.gmra.mrb[0].mxu0 %v713
        %v758 = vpop.f32.mrb[0].mxu0
        %v759 = vadd.f32 0.0, %v758
        %v760 = vpop.f32.mrb[0].mxu0
        %v761 = vadd.f32 0.0, %v760
        %v762 = vpop.f32.mrb[0].mxu0
        %v763 = vpop.f32.mrb[0].mxu0
        %764 = vdwg.mxu0
        %765 = vmatprep.subr.bf16.mxu0 0
        %766 = vmatpush1.bf16.msra.mxu0 %v722
        %767 = vmatprep.subr.bf16.mxu0 0
        %768 = vmatpush1.bf16.msra.mxu0 0
        %769 = vmatprep.subr.bf16.mxu0 0
        %770 = vmatpush1.bf16.msra.mxu0 0
        %771 = vmatprep.subr.bf16.mxu0 0
        %772 = vmatpush1.bf16.msra.mxu0 0
        %773 = vmatprep.subr.bf16.mxu0 0
        %774 = vmatpush1.bf16.msra.mxu0 0
        %775 = vmatprep.subr.bf16.mxu0 0
        %776 = vmatpush1.bf16.msra.mxu0 0
        %777 = vmatprep.subr.bf16.mxu0 0
        %778 = vmatpush1.bf16.msra.mxu0 0
        %779 = vmatprep.subr.bf16.mxu0 0
        %780 = vmatpush1.bf16.msra.mxu0 0
        %781 = vmatprep.subr.bf16.mxu0 0
        %782 = vmatpush1.bf16.msra.mxu0 0
        %783 = vmatprep.subr.bf16.mxu0 0
        %784 = vmatpush1.bf16.msra.mxu0 0
        %785 = vmatprep.subr.bf16.mxu0 0
        %786 = vmatpush1.bf16.msra.mxu0 0
        %787 = vmatprep.subr.bf16.mxu0 0
        %788 = vmatpush1.bf16.msra.mxu0 0
        %789 = vmatprep.subr.bf16.mxu0 0
        %790 = vmatpush1.bf16.msra.mxu0 0
        %791 = vmatprep.subr.bf16.mxu0 0
        %792 = vmatpush1.bf16.msra.mxu0 0
        %793 = vmatprep.subr.bf16.mxu0 0
        %794 = vmatpush1.bf16.msra.mxu0 0
        %795 = vmatprep.subr.bf16.mxu0 0
        %796 = vmatpush1.bf16.msra.mxu0 0
        %797 = vmatprep.mubr.bf16.mxu0 0
        %798 = vmatmul.mubr.bf16.gmra.mrb[0].mxu0 %v713
        %v799 = vpop.f32.mrb[0].mxu0
        %v800 = vadd.f32 0.0, %v799
        %v801 = vpop.f32.mrb[0].mxu0
        %v802 = vpop.f32.mrb[0].mxu0
        %v803 = vpop.f32.mrb[0].mxu0
        %804 = vdwg.mxu0
        %v805 = vadd.f32 %v698, %v759
        %v806 = vadd.f32 %v699, %v761
        %v807 = vadd.f32 %v700, %v800
        %s808 = scalar_lea.vmem %s1, 24
        %v809 = vld [vmem:[%s808] sm:$0xf]
        %810 = vrot.lane.b32.xlu0 %v180, 92
        %v811 = vpop.permute.xlu0 %810
        %812 = vrot.lane.b32.xlu0 %v181, 92
        %v813 = vpop.permute.xlu0 %812
        %814 = vrot.lane.b32.xlu0 %v182, 92
        %v815 = vpop.permute.xlu0 %814
        %vm816 = vcmask 752640
        %v817 = vsel %vm816, %v811, %v813
        %v818 = vsel %vm816, %v813, %v815
        %v820 = vsel %vm192, %v809, 0
        %v823 = vsel %vm196, %v817, 0
        %v826 = vsel %vm196, %v818, 0
        %v829 = vsel %vm196, %v815, 0
        %831 = vmatprep.subr.bf16.mxu0 %v826
        %832 = vmatpush1.bf16.msra.mxu0 %v823
        %833 = vmatprep.subr.bf16.mxu0 0
        %834 = vmatpush1.bf16.msra.mxu0 0
        %835 = vmatprep.subr.bf16.mxu0 0
        %836 = vmatpush1.bf16.msra.mxu0 0
        %837 = vmatprep.subr.bf16.mxu0 0
        %838 = vmatpush1.bf16.msra.mxu0 0
        %839 = vmatprep.subr.bf16.mxu0 0
        %840 = vmatpush1.bf16.msra.mxu0 0
        %841 = vmatprep.subr.bf16.mxu0 0
        %842 = vmatpush1.bf16.msra.mxu0 0
        %843 = vmatprep.subr.bf16.mxu0 0
        %844 = vmatpush1.bf16.msra.mxu0 0
        %845 = vmatprep.subr.bf16.mxu0 0
        %846 = vmatpush1.bf16.msra.mxu0 0
        %847 = vmatprep.subr.bf16.mxu0 0
        %848 = vmatpush1.bf16.msra.mxu0 0
        %849 = vmatprep.subr.bf16.mxu0 0
        %850 = vmatpush1.bf16.msra.mxu0 0
        %851 = vmatprep.subr.bf16.mxu0 0
        %852 = vmatpush1.bf16.msra.mxu0 0
        %853 = vmatprep.subr.bf16.mxu0 0
        %854 = vmatpush1.bf16.msra.mxu0 0
        %855 = vmatprep.subr.bf16.mxu0 0
        %856 = vmatpush1.bf16.msra.mxu0 0
        %857 = vmatprep.subr.bf16.mxu0 0
        %858 = vmatpush1.bf16.msra.mxu0 0
        %859 = vmatprep.subr.bf16.mxu0 0
        %860 = vmatpush1.bf16.msra.mxu0 0
        %861 = vmatprep.subr.bf16.mxu0 0
        %862 = vmatpush1.bf16.msra.mxu0 0
        %863 = vmatprep.mubr.bf16.mxu0 0
        %864 = vmatmul.mubr.bf16.gmra.mrb[0].mxu0 %v820
        %v865 = vpop.f32.mrb[0].mxu0
        %v866 = vadd.f32 0.0, %v865
        %v867 = vpop.f32.mrb[0].mxu0
        %v868 = vadd.f32 0.0, %v867
        %v869 = vpop.f32.mrb[0].mxu0
        %v870 = vpop.f32.mrb[0].mxu0
        %871 = vdwg.mxu0
        %872 = vmatprep.subr.bf16.mxu0 0
        %873 = vmatpush1.bf16.msra.mxu0 %v829
        %874 = vmatprep.subr.bf16.mxu0 0
        %875 = vmatpush1.bf16.msra.mxu0 0
        %876 = vmatprep.subr.bf16.mxu0 0
        %877 = vmatpush1.bf16.msra.mxu0 0
        %878 = vmatprep.subr.bf16.mxu0 0
        %879 = vmatpush1.bf16.msra.mxu0 0
        %880 = vmatprep.subr.bf16.mxu0 0
        %881 = vmatpush1.bf16.msra.mxu0 0
        %882 = vmatprep.subr.bf16.mxu0 0
        %883 = vmatpush1.bf16.msra.mxu0 0
        %884 = vmatprep.subr.bf16.mxu0 0
        %885 = vmatpush1.bf16.msra.mxu0 0
        %886 = vmatprep.subr.bf16.mxu0 0
        %887 = vmatpush1.bf16.msra.mxu0 0
        %888 = vmatprep.subr.bf16.mxu0 0
        %889 = vmatpush1.bf16.msra.mxu0 0
        %890 = vmatprep.subr.bf16.mxu0 0
        %891 = vmatpush1.bf16.msra.mxu0 0
        %892 = vmatprep.subr.bf16.mxu0 0
        %893 = vmatpush1.bf16.msra.mxu0 0
        %894 = vmatprep.subr.bf16.mxu0 0
        %895 = vmatpush1.bf16.msra.mxu0 0
        %896 = vmatprep.subr.bf16.mxu0 0
        %897 = vmatpush1.bf16.msra.mxu0 0
        %898 = vmatprep.subr.bf16.mxu0 0
        %899 = vmatpush1.bf16.msra.mxu0 0
        %900 = vmatprep.subr.bf16.mxu0 0
        %901 = vmatpush1.bf16.msra.mxu0 0
        %902 = vmatprep.subr.bf16.mxu0 0
        %903 = vmatpush1.bf16.msra.mxu0 0
        %904 = vmatprep.mubr.bf16.mxu0 0
        %905 = vmatmul.mubr.bf16.gmra.mrb[0].mxu0 %v820
        %v906 = vpop.f32.mrb[0].mxu0
        %v907 = vadd.f32 0.0, %v906
        %v908 = vpop.f32.mrb[0].mxu0
        %v909 = vpop.f32.mrb[0].mxu0
        %v910 = vpop.f32.mrb[0].mxu0
        %911 = vdwg.mxu0
        %v912 = vadd.f32 %v805, %v866
        %v913 = vadd.f32 %v806, %v868
        %v914 = vadd.f32 %v807, %v907
        %s915 = scalar_lea.vmem %s1, 28
        %v916 = vld [vmem:[%s915] sm:$0xf]
        %917 = vrot.lane.b32.xlu0 %v180, 91
        %v918 = vpop.permute.xlu0 %917
        %919 = vrot.lane.b32.xlu0 %v181, 91
        %v920 = vpop.permute.xlu0 %919
        %921 = vrot.lane.b32.xlu0 %v182, 91
        %v922 = vpop.permute.xlu0 %921
        %vm923 = vcmask 744448
        %v924 = vsel %vm923, %v918, %v920
        %v925 = vsel %vm923, %v920, %v922
        %v927 = vsel %vm192, %v916, 0
        %v930 = vsel %vm196, %v924, 0
        %v933 = vsel %vm196, %v925, 0
        %v936 = vsel %vm196, %v922, 0
        %938 = vmatprep.subr.bf16.mxu0 %v933
        %939 = vmatpush1.bf16.msra.mxu0 %v930
        %940 = vmatprep.subr.bf16.mxu0 0
        %941 = vmatpush1.bf16.msra.mxu0 0
        %942 = vmatprep.subr.bf16.mxu0 0
        %943 = vmatpush1.bf16.msra.mxu0 0
        %944 = vmatprep.subr.bf16.mxu0 0
        %945 = vmatpush1.bf16.msra.mxu0 0
        %946 = vmatprep.subr.bf16.mxu0 0
        %947 = vmatpush1.bf16.msra.mxu0 0
        %948 = vmatprep.subr.bf16.mxu0 0
        %949 = vmatpush1.bf16.msra.mxu0 0
        %950 = vmatprep.subr.bf16.mxu0 0
        %951 = vmatpush1.bf16.msra.mxu0 0
        %952 = vmatprep.subr.bf16.mxu0 0
        %953 = vmatpush1.bf16.msra.mxu0 0
        %954 = vmatprep.subr.bf16.mxu0 0
        %955 = vmatpush1.bf16.msra.mxu0 0
        %956 = vmatprep.subr.bf16.mxu0 0
        %957 = vmatpush1.bf16.msra.mxu0 0
        %958 = vmatprep.subr.bf16.mxu0 0
        %959 = vmatpush1.bf16.msra.mxu0 0
        %960 = vmatprep.subr.bf16.mxu0 0
        %961 = vmatpush1.bf16.msra.mxu0 0
        %962 = vmatprep.subr.bf16.mxu0 0
        %963 = vmatpush1.bf16.msra.mxu0 0
        %964 = vmatprep.subr.bf16.mxu0 0
        %965 = vmatpush1.bf16.msra.mxu0 0
        %966 = vmatprep.subr.bf16.mxu0 0
        %967 = vmatpush1.bf16.msra.mxu0 0
        %968 = vmatprep.subr.bf16.mxu0 0
        %969 = vmatpush1.bf16.msra.mxu0 0
        %970 = vmatprep.mubr.bf16.mxu0 0
        %971 = vmatmul.mubr.bf16.gmra.mrb[0].mxu0 %v927
        %v972 = vpop.f32.mrb[0].mxu0
        %v973 = vadd.f32 0.0, %v972
        %v974 = vpop.f32.mrb[0].mxu0
        %v975 = vadd.f32 0.0, %v974
        %v976 = vpop.f32.mrb[0].mxu0
        %v977 = vpop.f32.mrb[0].mxu0
        %978 = vdwg.mxu0
        %979 = vmatprep.subr.bf16.mxu0 0
        %980 = vmatpush1.bf16.msra.mxu0 %v936
        %981 = vmatprep.subr.bf16.mxu0 0
        %982 = vmatpush1.bf16.msra.mxu0 0
        %983 = vmatprep.subr.bf16.mxu0 0
        %984 = vmatpush1.bf16.msra.mxu0 0
        %985 = vmatprep.subr.bf16.mxu0 0
        %986 = vmatpush1.bf16.msra.mxu0 0
        %987 = vmatprep.subr.bf16.mxu0 0
        %988 = vmatpush1.bf16.msra.mxu0 0
        %989 = vmatprep.subr.bf16.mxu0 0
        %990 = vmatpush1.bf16.msra.mxu0 0
        %991 = vmatprep.subr.bf16.mxu0 0
        %992 = vmatpush1.bf16.msra.mxu0 0
        %993 = vmatprep.subr.bf16.mxu0 0
        %994 = vmatpush1.bf16.msra.mxu0 0
        %995 = vmatprep.subr.bf16.mxu0 0
        %996 = vmatpush1.bf16.msra.mxu0 0
        %997 = vmatprep.subr.bf16.mxu0 0
        %998 = vmatpush1.bf16.msra.mxu0 0
        %999 = vmatprep.subr.bf16.mxu0 0
        %1000 = vmatpush1.bf16.msra.mxu0 0
        %1001 = vmatprep.subr.bf16.mxu0 0
        %1002 = vmatpush1.bf16.msra.mxu0 0
        %1003 = vmatprep.subr.bf16.mxu0 0
        %1004 = vmatpush1.bf16.msra.mxu0 0
        %1005 = vmatprep.subr.bf16.mxu0 0
        %1006 = vmatpush1.bf16.msra.mxu0 0
        %1007 = vmatprep.subr.bf16.mxu0 0
        %1008 = vmatpush1.bf16.msra.mxu0 0
        %1009 = vmatprep.subr.bf16.mxu0 0
        %1010 = vmatpush1.bf16.msra.mxu0 0
        %1011 = vmatprep.mubr.bf16.mxu0 0
        %1012 = vmatmul.mubr.bf16.gmra.mrb[0].mxu0 %v927
        %v1013 = vpop.f32.mrb[0].mxu0
        %v1014 = vadd.f32 0.0, %v1013
        %v1015 = vpop.f32.mrb[0].mxu0
        %v1016 = vpop.f32.mrb[0].mxu0
        %v1017 = vpop.f32.mrb[0].mxu0
        %1018 = vdwg.mxu0
        %v1019 = vadd.f32 %v912, %v973
        %v1020 = vadd.f32 %v913, %v975
        %v1021 = vadd.f32 %v914, %v1014
        %s1022 = scalar_lea.vmem %s1, 32
        %v1023 = vld [vmem:[%s1022] sm:$0xf]
        %1024 = vrot.lane.b32.xlu0 %v180, 90
        %v1025 = vpop.permute.xlu0 %1024
        %1026 = vrot.lane.b32.xlu0 %v181, 90
        %v1027 = vpop.permute.xlu0 %1026
        %1028 = vrot.lane.b32.xlu0 %v182, 90
        %v1029 = vpop.permute.xlu0 %1028
        %vm1030 = vcmask 736256
        %v1031 = vsel %vm1030, %v1025, %v1027
        %v1032 = vsel %vm1030, %v1027, %v1029
        %v1034 = vsel %vm192, %v1023, 0
        %v1037 = vsel %vm196, %v1031, 0
        %v1040 = vsel %vm196, %v1032, 0
        %v1043 = vsel %vm196, %v1029, 0
        %1045 = vmatprep.subr.bf16.mxu0 %v1040
        %1046 = vmatpush1.bf16.msra.mxu0 %v1037
        %1047 = vmatprep.subr.bf16.mxu0 0
        %1048 = vmatpush1.bf16.msra.mxu0 0
        %1049 = vmatprep.subr.bf16.mxu0 0
        %1050 = vmatpush1.bf16.msra.mxu0 0
        %1051 = vmatprep.subr.bf16.mxu0 0
        %1052 = vmatpush1.bf16.msra.mxu0 0
        %1053 = vmatprep.subr.bf16.mxu0 0
        %1054 = vmatpush1.bf16.msra.mxu0 0
        %1055 = vmatprep.subr.bf16.mxu0 0
        %1056 = vmatpush1.bf16.msra.mxu0 0
        %1057 = vmatprep.subr.bf16.mxu0 0
        %1058 = vmatpush1.bf16.msra.mxu0 0
        %1059 = vmatprep.subr.bf16.mxu0 0
        %1060 = vmatpush1.bf16.msra.mxu0 0
        %1061 = vmatprep.subr.bf16.mxu0 0
        %1062 = vmatpush1.bf16.msra.mxu0 0
        %1063 = vmatprep.subr.bf16.mxu0 0
        %1064 = vmatpush1.bf16.msra.mxu0 0
        %1065 = vmatprep.subr.bf16.mxu0 0
        %1066 = vmatpush1.bf16.msra.mxu0 0
        %1067 = vmatprep.subr.bf16.mxu0 0
        %1068 = vmatpush1.bf16.msra.mxu0 0
        %1069 = vmatprep.subr.bf16.mxu0 0
        %1070 = vmatpush1.bf16.msra.mxu0 0
        %1071 = vmatprep.subr.bf16.mxu0 0
        %1072 = vmatpush1.bf16.msra.mxu0 0
        %1073 = vmatprep.subr.bf16.mxu0 0
        %1074 = vmatpush1.bf16.msra.mxu0 0
        %1075 = vmatprep.subr.bf16.mxu0 0
        %1076 = vmatpush1.bf16.msra.mxu0 0
        %1077 = vmatprep.mubr.bf16.mxu0 0
        %1078 = vmatmul.mubr.bf16.gmra.mrb[0].mxu0 %v1034
        %v1079 = vpop.f32.mrb[0].mxu0
        %v1080 = vadd.f32 0.0, %v1079
        %v1081 = vpop.f32.mrb[0].mxu0
        %v1082 = vadd.f32 0.0, %v1081
        %v1083 = vpop.f32.mrb[0].mxu0
        %v1084 = vpop.f32.mrb[0].mxu0
        %1085 = vdwg.mxu0
        %1086 = vmatprep.subr.bf16.mxu0 0
        %1087 = vmatpush1.bf16.msra.mxu0 %v1043
        %1088 = vmatprep.subr.bf16.mxu0 0
        %1089 = vmatpush1.bf16.msra.mxu0 0
        %1090 = vmatprep.subr.bf16.mxu0 0
        %1091 = vmatpush1.bf16.msra.mxu0 0
        %1092 = vmatprep.subr.bf16.mxu0 0
        %1093 = vmatpush1.bf16.msra.mxu0 0
        %1094 = vmatprep.subr.bf16.mxu0 0
        %1095 = vmatpush1.bf16.msra.mxu0 0
        %1096 = vmatprep.subr.bf16.mxu0 0
        %1097 = vmatpush1.bf16.msra.mxu0 0
        %1098 = vmatprep.subr.bf16.mxu0 0
        %1099 = vmatpush1.bf16.msra.mxu0 0
        %1100 = vmatprep.subr.bf16.mxu0 0
        %1101 = vmatpush1.bf16.msra.mxu0 0
        %1102 = vmatprep.subr.bf16.mxu0 0
        %1103 = vmatpush1.bf16.msra.mxu0 0
        %1104 = vmatprep.subr.bf16.mxu0 0
        %1105 = vmatpush1.bf16.msra.mxu0 0
        %1106 = vmatprep.subr.bf16.mxu0 0
        %1107 = vmatpush1.bf16.msra.mxu0 0
        %1108 = vmatprep.subr.bf16.mxu0 0
        %1109 = vmatpush1.bf16.msra.mxu0 0
        %1110 = vmatprep.subr.bf16.mxu0 0
        %1111 = vmatpush1.bf16.msra.mxu0 0
        %1112 = vmatprep.subr.bf16.mxu0 0
        %1113 = vmatpush1.bf16.msra.mxu0 0
        %1114 = vmatprep.subr.bf16.mxu0 0
        %1115 = vmatpush1.bf16.msra.mxu0 0
        %1116 = vmatprep.subr.bf16.mxu0 0
        %1117 = vmatpush1.bf16.msra.mxu0 0
        %1118 = vmatprep.mubr.bf16.mxu0 0
        %1119 = vmatmul.mubr.bf16.gmra.mrb[0].mxu0 %v1034
        %v1120 = vpop.f32.mrb[0].mxu0
        %v1121 = vadd.f32 0.0, %v1120
        %v1122 = vpop.f32.mrb[0].mxu0
        %v1123 = vpop.f32.mrb[0].mxu0
        %v1124 = vpop.f32.mrb[0].mxu0
        %1125 = vdwg.mxu0
        %v1126 = vadd.f32 %v1019, %v1080
        %v1127 = vadd.f32 %v1020, %v1082
        %v1128 = vadd.f32 %v1021, %v1121
        %v1129 = vld [vmem:[%s2] sm:$0x7]
        %v1131 = vlaneseq
        %v1132 = vshrl.u32 %v1131, 7
        %v1133 = vsub.s32 0, %v1132
        %v1134 = vrot.slane %v1129, %v1133
        %v1135 = vlaneseq
        %v1136 = vshrl.u32 %v1135, 7
        %v1137 = vsub.s32 1, %v1136
        %v1138 = vrot.slane %v1129, %v1137
        %v1139 = vlaneseq
        %v1140 = vshrl.u32 %v1139, 7
        %v1141 = vsub.s32 2, %v1140
        %v1142 = vrot.slane %v1129, %v1141
        %v1146 = vmul.f32 %v1126, %v1134
        %v1147 = vmul.f32 %v1127, %v1138
        %v1148 = vmul.f32 %v1128, %v1142
        %v1149 = vadd.f32 %v1146, %v1147
        %vm1150 = vcmask 261120
        %v1151 = vsel %vm1150, %v1148, 0.0
        %v1152 = vadd.f32 %v1149, %v1151
        %1153 = vadd.xlane.f32.xlu0 %v1152
        %v1154 = vpop.xlane.xlu0 %1153
        %v1155 = vmul.f32 %v1146, %v1126
        %v1156 = vmul.f32 %v1147, %v1127
        %v1157 = vmul.f32 %v1148, %v1128
        %v1158 = vadd.f32 %v1155, %v1156
        %v1159 = vsel %vm1150, %v1157, 0.0
        %v1160 = vadd.f32 %v1158, %v1159
        %1161 = vadd.xlane.f32.xlu0 %v1160
        %v1162 = vpop.xlane.xlu0 %1161
        %v1163 = vlaneseq
        %v1164 = vand.u32 %v1163, 127
        %vm1165 = vcmp.eq.s32.totalorder %v1164, 0
        %vm1166 = vcmp.eq.s32.totalorder %v1164, 1
        %v1167 = vsel %vm1166, %v1162, 0.0
        %v1168 = vsel %vm1165, %v1154, %v1167
        %1169 = vst [vmem:[%s163] sm:$0xff] %v1168
        %s1170 = sand.u32 %s93, 1
        %s1171 = scalar_lea.sflag [#allocation3], %s1170
        %s1172 = sand.u32 %s93, 1
        %s1173 = smul.addr %s1172, 8
        %s1174 = scalar_lea.vmem [#allocation2], %s1173
        // Predicated region
        $region33: #{tpu_custom_call.1} parent=31 // pred_check
          %p1175 = pneg %p103
        $region34: #{tpu_custom_call.1} parent=31 // pred_check_branch
          %1177 = sbr.rel (%p1175) target = $region36
        $region35: #{tpu_custom_call.1} parent=31 // pred_region
          %s1179 = ssub.s32 128, 128
          %1180 = vsyncadd %s1171, %s1179
          %s1181 = smul.addr %s17, 128
          %s1182 = scalar_lea.hbm %s3, %s1181
          %s1184 = sshll.u32 %s1174, 4
          %s1185 = int_to_ptr.vmem [resolvable:$true] %s1184
          %1187 = dma.vmem_to_hbm [thread:$0]  %s1185, 128, %s1182, %s1171
        $region36: #{tpu_custom_call.1} parent=31 // pred_fallthru
          _
      $region32: #{tpu_custom_call.1} parent=5 // pred_fallthru
        _
      %p1188 = scmp.le.s32.totalorder 2, %s12
      // Predicated region
      $region37: #{tpu_custom_call.1} parent=5 // pred_check
        %p1189 = pneg %p1188
      $region38: #{tpu_custom_call.1} parent=5 // pred_check_branch
        %1191 = sbr.rel (%p1189) target = $region40
      $region39: #{tpu_custom_call.1} parent=5 // pred_region
        %s1192 = ssub.s32 %s12, 2
        // Predicated region
        $region41: #{tpu_custom_call.1} parent=39 // pred_check
          %p1193 = pneg %p109
        $region42: #{tpu_custom_call.1} parent=39 // pred_check_branch
          %1195 = sbr.rel (%p1193) target = $region44
        $region43: #{tpu_custom_call.1} parent=39 // pred_region
          %s1196 = sand.u32 %s94, 1
          %s1197 = scalar_lea.sflag [#allocation3], %s1196
          %s1198 = sand.u32 %s94, 1
          %s1199 = smul.addr %s1198, 8
          %s1200 = scalar_lea.vmem [#allocation2], %s1199
          %1201 = dma.done %s1197, 128
        $region44: #{tpu_custom_call.1} parent=39 // pred_fallthru
          _
      $region40: #{tpu_custom_call.1} parent=5 // pred_fallthru
        _
    $region6: #{tpu_custom_call.1} parent=1 // loop_footer
      %s16 = sadd.s32 1, %s12
    $region7: #{tpu_custom_call.1} parent=1 // loop_footer_branch
      %11 = sbr.rel target = $region3
    $region8: #{tpu_custom_call.1} parent=1 // loop_exit
      _
    %1202 = vsyncpa [#allocation3], 1
    %s1203 = scalar_lea.sflag [#allocation3], 1
    %1204 = vsyncpa %s1203, 1

</llo_original>
